<compile_context>
chip_gen: v7x
topology: tpu7x:2x2x1
jax: 0.10.0
libtpu: 0.0.40
codegen_flags: <defaults>
</compile_context>

<pallas_src>
import functools
import math

import jax
import jax.numpy as jnp
from jax.experimental import pallas as pl
from jax.experimental.pallas import tpu as pltpu


def _swish(x):
    return x * jax.nn.sigmoid(x)


def _round_up(x, m):
    return (x + m - 1) // m * m


# ---------------------------------------------------------------------------
# Kernel: one invocation, ensemble packed into the lane axis.
#   x_ref : (Np, E*Din)           activations, f32
#   w*_ref: block-diagonal packed weights
#   b_ref : (5, W) packed biases (row i = bias of layer i+1), f32
#   o_ref : (Np, E*Dout_p)        lane-dense output slab
# ---------------------------------------------------------------------------
def ensemble_mlp_packed_kernel(x_ref, w1_ref, w2_ref, w3_ref, w4_ref, w5_ref,
                               b_ref, o_ref):
    eh = w2_ref.shape[0]      # E * hidden_size    (packed hidden lane width)
    eo = w5_ref.shape[1]      # E * padded out dim (packed output lane width)

    def layer(h, w_ref, b_row, width, act):
        y = jnp.dot(h.astype(w_ref.dtype), w_ref[...],
                    preferred_element_type=jnp.float32)
        y = y + b_ref[b_row:b_row + 1, :width]       # (1, width) broadcast add
        return _swish(y) if act else y

    h = x_ref[...]
    h = layer(h, w1_ref, 0, eh, True)    # nn1 + swish
    h = layer(h, w2_ref, 1, eh, True)    # nn2 + swish (+dropout = identity)
    h = layer(h, w3_ref, 2, eh, True)    # nn3 + swish (+dropout = identity)
    h = layer(h, w4_ref, 3, eh, True)    # nn4 + swish (+dropout = identity)
    h = layer(h, w5_ref, 4, eo, False)   # nn5 (no activation)
    o_ref[...] = h.astype(o_ref.dtype)


# ---------------------------------------------------------------------------
# One-time parameter packing (NOT per call): block-diagonal weights, packed
# biases, lane-dense padded output dim.
# ---------------------------------------------------------------------------
def pack_ensemble_params(params, *, compute_dtype=jnp.float32):
    E, din, H = params["w1"].shape
    dout = params["w5"].shape[2]

    # Pad the per-member output dim so E*dout_p is a multiple of 128:
    # lane-dense output slab -> unmasked vector stores.
    dout_p = _round_up(dout, max(1, 128 // math.gcd(E, 128)))

    def block_diag(w, pad_out_to=None):
        e, di, do = w.shape
        if pad_out_to is not None and pad_out_to != do:
            w = jnp.pad(w, ((0, 0), (0, 0), (0, pad_out_to - do)))
            do = pad_out_to
        out = jnp.zeros((e * di, e * do), w.dtype)
        for i in range(e):
            out = out.at[i * di:(i + 1) * di, i * do:(i + 1) * do].set(w[i])
        return out

    w1 = block_diag(params["w1"]).astype(compute_dtype)              # (E*Din, E*H)
    w2 = block_diag(params["w2"]).astype(compute_dtype)              # (E*H,  E*H)
    w3 = block_diag(params["w3"]).astype(compute_dtype)
    w4 = block_diag(params["w4"]).astype(compute_dtype)
    w5 = block_diag(params["w5"], pad_out_to=dout_p).astype(compute_dtype)

    eh = E * H
    eo = E * dout_p
    width = max(eh, eo)

    def pack_bias(b, per_member_pad, total):
        b = jnp.pad(b, ((0, 0), (0, per_member_pad - b.shape[1]))).reshape(-1)
        return jnp.pad(b, (0, total - b.shape[0]))

    biases = jnp.stack([
        pack_bias(params["b1"], H, width),
        pack_bias(params["b2"], H, width),
        pack_bias(params["b3"], H, width),
        pack_bias(params["b4"], H, width),
        pack_bias(params["b5"], dout_p, width),
    ]).astype(jnp.float32)                                           # (5, width)

    packed = dict(w1=w1, w2=w2, w3=w3, w4=w4, w5=w5, biases=biases)
    return packed, dout_p


# ---------------------------------------------------------------------------
# Forward wrapper: pack x into lane layout, call the kernel once, unpack.
# ---------------------------------------------------------------------------
@functools.partial(jax.jit, static_argnames=("dout", "dout_p"))
def ensemble_model_forward(x, packed, *, dout, dout_p):
    E, N, din = x.shape
    eo = packed["w5"].shape[1]
    n_pad = _round_up(N, 8)

    # (E, N, Din) -> lane-packed (Np, E*Din); member e occupies lanes
    # [e*Din, (e+1)*Din), matching the block-diagonal weight layout.
    xp = jnp.transpose(x, (1, 0, 2)).reshape(N, E * din)
    xp = jnp.pad(xp, ((0, n_pad - N), (0, 0))).astype(jnp.float32)

    vmem = pl.BlockSpec(memory_space=pltpu.MemorySpace.VMEM)
    out = pl.pallas_call(
        ensemble_mlp_packed_kernel,
        out_shape=jax.ShapeDtypeStruct((n_pad, eo), jnp.float32),
        in_specs=[vmem] * 7,
        out_specs=vmem,
    )(xp, packed["w1"], packed["w2"], packed["w3"], packed["w4"],
      packed["w5"], packed["biases"])

    # (Np, E*dout_p) -> (E, N, dout)
    out = out[:N].reshape(N, E, dout_p)[:, :, :dout]
    return jnp.transpose(out, (1, 0, 2))


# ---------------------------------------------------------------------------
# Parameter init (mirrors init_weights): truncated normal weights with
# std = 1/(2*sqrt(in_features)), clipped to +-2 std; zero biases.
# ---------------------------------------------------------------------------
def init_ensemble_params(key, state_size, action_size, reward_size,
                         ensemble_size, hidden_size):
    in_dim = state_size + action_size
    out_dim = state_size + reward_size
    dims = [(in_dim, hidden_size),
            (hidden_size, hidden_size),
            (hidden_size, hidden_size),
            (hidden_size, hidden_size),
            (hidden_size, out_dim)]
    params = {}
    keys = jax.random.split(key, len(dims))
    for i, ((din, dout), k) in enumerate(zip(dims, keys), start=1):
        std = 1.0 / (2.0 * jnp.sqrt(jnp.asarray(din, jnp.float32)))
        w = jax.random.truncated_normal(
            k, -2.0, 2.0, (ensemble_size, din, dout), jnp.float32) * std
        params[f"w{i}"] = w
        params[f"b{i}"] = jnp.zeros((ensemble_size, dout), jnp.float32)
    return params


def reference_forward(x, params):
    """Pure-JAX reference of EnsembleModel.forward (eval mode)."""
    def layer(h, w, bb, act):
        y = jnp.einsum("end,edh->enh", h, w) + bb[:, None, :]
        return _swish(y) if act else y

    h = layer(x, params["w1"], params["b1"], True)
    h = layer(h, params["w2"], params["b2"], True)
    h = layer(h, params["w3"], params["b3"], True)
    h = layer(h, params["w4"], params["b4"], True)
    return layer(h, params["w5"], params["b5"], False)


if __name__ == "__main__":
    state_size = 4
    action_size = 3
    reward_size = 1
    ensemble_size = 4
    hidden_size = 32     # E*H = 128 -> one full lane vreg of packed activations
    batch = 8

    key = jax.random.PRNGKey(0)
    k_param, k_x = jax.random.split(key)

    params = init_ensemble_params(k_param, state_size, action_size,
                                  reward_size, ensemble_size, hidden_size)
    # One-time packing (block-diagonal weights, packed biases). For production
    # sizes pass compute_dtype=jnp.bfloat16 (f32 accumulation is kept in-kernel).
    packed, dout_p = pack_ensemble_params(params, compute_dtype=jnp.float32)

    x = jax.random.normal(
        k_x, (ensemble_size, batch, state_size + action_size), jnp.float32)

    mean = ensemble_model_forward(x, packed,
                                  dout=state_size + reward_size, dout_p=dout_p)
    mean = jax.block_until_ready(mean)

    ref = reference_forward(x, params)
    assert mean.shape == (ensemble_size, batch, state_size + reward_size)
    assert jnp.allclose(mean, ref, atol=1e-5, rtol=1e-5)

    print("KERNEL_OK")
</pallas_src>

<mosaic_0001>
module attributes {stable_mosaic.version = 11 : i64} {
  func.func @ensemble_mlp_packed_kernel(%arg0: memref<8x28xf32, #tpu.memory_space<vmem>>, %arg1: memref<28x128xf32, #tpu.memory_space<vmem>>, %arg2: memref<128x128xf32, #tpu.memory_space<vmem>>, %arg3: memref<128x128xf32, #tpu.memory_space<vmem>>, %arg4: memref<128x128xf32, #tpu.memory_space<vmem>>, %arg5: memref<128x128xf32, #tpu.memory_space<vmem>>, %arg6: memref<5x128xf32, #tpu.memory_space<vmem>>, %arg7: memref<8x128xf32, #tpu.memory_space<vmem>>) attributes {dimension_semantics = [], scalar_prefetch = 0 : i64, scratch_operands = 0 : i64, tpu.core_type = #tpu.core_type<tc>} {
    %c0 = arith.constant 0 : index
    %c0_0 = arith.constant 0 : index
    %0 = vector.load %arg0[%c0, %c0_0] : memref<8x28xf32, #tpu.memory_space<vmem>>, vector<8x28xf32>
    %c0_1 = arith.constant 0 : index
    %c0_2 = arith.constant 0 : index
    %1 = vector.load %arg1[%c0_1, %c0_2] : memref<28x128xf32, #tpu.memory_space<vmem>>, vector<28x128xf32>
    %cst = arith.constant dense<0.000000e+00> : vector<8x128xf32>
    %2 = tpu.matmul %0, %1, %cst {dimension_numbers = #tpu.dot_dimension_numbers<[1], [0], [0], [1], [0, 0, 1, 1], [], []>} : vector<8x28xf32>, vector<28x128xf32>, vector<8x128xf32> -> vector<8x128xf32>
    %c0_3 = arith.constant 0 : index
    %c0_4 = arith.constant 0 : index
    %3 = vector.load %arg6[%c0_3, %c0_4] : memref<5x128xf32, #tpu.memory_space<vmem>>, vector<1x128xf32>
    %4 = vector.broadcast %3 : vector<1x128xf32> to vector<8x128xf32>
    %5 = arith.addf %2, %4 : vector<8x128xf32>
    %6 = arith.negf %5 : vector<8x128xf32>
    %7 = math.exp %6 : vector<8x128xf32>
    %cst_5 = arith.constant 1.000000e+00 : f32
    %8 = vector.broadcast %cst_5 : f32 to vector<8x128xf32>
    %9 = arith.addf %8, %7 : vector<8x128xf32>
    %10 = arith.divf %8, %9 : vector<8x128xf32>
    %11 = arith.mulf %5, %10 : vector<8x128xf32>
    %c0_6 = arith.constant 0 : index
    %c0_7 = arith.constant 0 : index
    %12 = vector.load %arg2[%c0_6, %c0_7] : memref<128x128xf32, #tpu.memory_space<vmem>>, vector<128x128xf32>
    %cst_8 = arith.constant dense<0.000000e+00> : vector<8x128xf32>
    %13 = tpu.matmul %11, %12, %cst_8 {dimension_numbers = #tpu.dot_dimension_numbers<[1], [0], [0], [1], [0, 0, 1, 1], [], []>} : vector<8x128xf32>, vector<128x128xf32>, vector<8x128xf32> -> vector<8x128xf32>
    %c1 = arith.constant 1 : index
    %c0_9 = arith.constant 0 : index
    %14 = vector.load %arg6[%c1, %c0_9] : memref<5x128xf32, #tpu.memory_space<vmem>>, vector<1x128xf32>
    %15 = vector.broadcast %14 : vector<1x128xf32> to vector<8x128xf32>
    %16 = arith.addf %13, %15 : vector<8x128xf32>
    %17 = arith.negf %16 : vector<8x128xf32>
    %18 = math.exp %17 : vector<8x128xf32>
    %cst_10 = arith.constant 1.000000e+00 : f32
    %19 = vector.broadcast %cst_10 : f32 to vector<8x128xf32>
    %20 = arith.addf %19, %18 : vector<8x128xf32>
    %21 = arith.divf %19, %20 : vector<8x128xf32>
    %22 = arith.mulf %16, %21 : vector<8x128xf32>
    %c0_11 = arith.constant 0 : index
    %c0_12 = arith.constant 0 : index
    %23 = vector.load %arg3[%c0_11, %c0_12] : memref<128x128xf32, #tpu.memory_space<vmem>>, vector<128x128xf32>
    %cst_13 = arith.constant dense<0.000000e+00> : vector<8x128xf32>
    %24 = tpu.matmul %22, %23, %cst_13 {dimension_numbers = #tpu.dot_dimension_numbers<[1], [0], [0], [1], [0, 0, 1, 1], [], []>} : vector<8x128xf32>, vector<128x128xf32>, vector<8x128xf32> -> vector<8x128xf32>
    %c2 = arith.constant 2 : index
    %c0_14 = arith.constant 0 : index
    %25 = vector.load %arg6[%c2, %c0_14] : memref<5x128xf32, #tpu.memory_space<vmem>>, vector<1x128xf32>
    %26 = vector.broadcast %25 : vector<1x128xf32> to vector<8x128xf32>
    %27 = arith.addf %24, %26 : vector<8x128xf32>
    %28 = arith.negf %27 : vector<8x128xf32>
    %29 = math.exp %28 : vector<8x128xf32>
    %cst_15 = arith.constant 1.000000e+00 : f32
    %30 = vector.broadcast %cst_15 : f32 to vector<8x128xf32>
    %31 = arith.addf %30, %29 : vector<8x128xf32>
    %32 = arith.divf %30, %31 : vector<8x128xf32>
    %33 = arith.mulf %27, %32 : vector<8x128xf32>
    %c0_16 = arith.constant 0 : index
    %c0_17 = arith.constant 0 : index
    %34 = vector.load %arg4[%c0_16, %c0_17] : memref<128x128xf32, #tpu.memory_space<vmem>>, vector<128x128xf32>
    %cst_18 = arith.constant dense<0.000000e+00> : vector<8x128xf32>
    %35 = tpu.matmul %33, %34, %cst_18 {dimension_numbers = #tpu.dot_dimension_numbers<[1], [0], [0], [1], [0, 0, 1, 1], [], []>} : vector<8x128xf32>, vector<128x128xf32>, vector<8x128xf32> -> vector<8x128xf32>
    %c3 = arith.constant 3 : index
    %c0_19 = arith.constant 0 : index
    %36 = vector.load %arg6[%c3, %c0_19] : memref<5x128xf32, #tpu.memory_space<vmem>>, vector<1x128xf32>
    %37 = vector.broadcast %36 : vector<1x128xf32> to vector<8x128xf32>
    %38 = arith.addf %35, %37 : vector<8x128xf32>
    %39 = arith.negf %38 : vector<8x128xf32>
    %40 = math.exp %39 : vector<8x128xf32>
    %cst_20 = arith.constant 1.000000e+00 : f32
    %41 = vector.broadcast %cst_20 : f32 to vector<8x128xf32>
    %42 = arith.addf %41, %40 : vector<8x128xf32>
    %43 = arith.divf %41, %42 : vector<8x128xf32>
    %44 = arith.mulf %38, %43 : vector<8x128xf32>
    %c0_21 = arith.constant 0 : index
    %c0_22 = arith.constant 0 : index
    %45 = vector.load %arg5[%c0_21, %c0_22] : memref<128x128xf32, #tpu.memory_space<vmem>>, vector<128x128xf32>
    %cst_23 = arith.constant dense<0.000000e+00> : vector<8x128xf32>
    %46 = tpu.matmul %44, %45, %cst_23 {dimension_numbers = #tpu.dot_dimension_numbers<[1], [0], [0], [1], [0, 0, 1, 1], [], []>} : vector<8x128xf32>, vector<128x128xf32>, vector<8x128xf32> -> vector<8x128xf32>
    %c4 = arith.constant 4 : index
    %c0_24 = arith.constant 0 : index
    %47 = vector.load %arg6[%c4, %c0_24] : memref<5x128xf32, #tpu.memory_space<vmem>>, vector<1x128xf32>
    %48 = vector.broadcast %47 : vector<1x128xf32> to vector<8x128xf32>
    %49 = arith.addf %46, %48 : vector<8x128xf32>
    %c0_25 = arith.constant 0 : index
    %c0_26 = arith.constant 0 : index
    %50 = vector.load %arg7[%c0_25, %c0_26] : memref<8x128xf32, #tpu.memory_space<vmem>>, vector<8x128xf32>
    tpu.vector_store %arg7[%c0_25, %c0_26], %49 {strides = array<i32>} : memref<8x128xf32, #tpu.memory_space<vmem>>, vector<8x128xf32>,
    return
  }
}

</mosaic_0001>

<llo_original>
// kernel: ensemble_model_forward.1
$region0: #{ensemble_model_forward.1}
  #allocation0 [shape = 'u32[]', space=smem, size = 0x4, offset = 0x4, fixed_abs, tag = 'smem constant byte address 0x4 - core index']
  #allocation1 [shape = 'u32[144,128]{1,0:T(1,128)}', space=vmem, size = 0x12000, scoped, tag = 'internal scratch']
  %s0 = inlined_call_operand.vmem [shape: f32[8,28], index: 0, kind: input, shape index: {}]
  %s1 = inlined_call_operand.vmem [shape: f32[28,128], index: 1, kind: input, shape index: {}]
  %s2 = inlined_call_operand.hbm [shape: f32[128,128], index: 2, kind: input, shape index: {}]
  %s3 = inlined_call_operand.hbm [shape: f32[128,128], index: 3, kind: input, shape index: {}]
  %s4 = inlined_call_operand.hbm [shape: f32[128,128], index: 4, kind: input, shape index: {}]
  %s5 = inlined_call_operand.hbm [shape: f32[128,128], index: 5, kind: input, shape index: {}]
  %s6 = inlined_call_operand.vmem [shape: f32[5,128], index: 6, kind: input, shape index: {}]
  %s7 = inlined_call_operand.vmem [shape: f32[8,128], index: 7, kind: output, shape index: {}]
  %s8 = sld [smem:[#allocation0]]
  $region54: #{ensemble_model_forward.1} parent=0
    _
  %s10 = ssub.s32 1, %s8
  %s11 = scalar_select 0, %s10, %s8
  $region1: #{ensemble_model_forward.1} parent=0
    #allocation2 [shape = 'u8[65536]{0}', space=vmem, size = 0x10000, scoped, tag = 'input window, operand 2, single buffered']
    #allocation3 [shape = 's32[1]{0}', space=sflag, size = 0x4, scoped, tag = 'scoped memory for ensemble_model_forward.1']
    #allocation4 [shape = 'u8[65536]{0}', space=vmem, size = 0x10000, scoped, tag = 'input window, operand 3, single buffered']
    #allocation5 [shape = 's32[1]{0}', space=sflag, size = 0x4, scoped, tag = 'scoped memory for ensemble_model_forward.1']
    #allocation6 [shape = 'u8[65536]{0}', space=vmem, size = 0x10000, scoped, tag = 'input window, operand 4, single buffered']
    #allocation7 [shape = 'u8[65536]{0}', space=vmem, size = 0x10000, scoped, tag = 'input window, operand 5, single buffered']
    #allocation8 [shape = 's32[1]{0}', space=sflag, size = 0x4, scoped, tag = 'scoped memory for ensemble_model_forward.1']
    %12 = vsyncpa [#allocation3], 0
    %13 = vsyncpa [#allocation5], 0
    %14 = vsyncpa [#allocation8], 0
    // Predicated region
    $region2: #{ensemble_model_forward.1} parent=1 // pred_check
      _
    $region3: #{ensemble_model_forward.1} parent=1 // pred_check_branch
      %16 = sbr.rel (0) target = $region5
    $region4: #{ensemble_model_forward.1} parent=1 // pred_region
      _
    $region5: #{ensemble_model_forward.1} parent=1 // pred_fallthru
      _
    // Predicated region
    $region6: #{ensemble_model_forward.1} parent=1 // pred_check
      _
    $region7: #{ensemble_model_forward.1} parent=1 // pred_check_branch
      %18 = sbr.rel (0) target = $region9
    $region8: #{ensemble_model_forward.1} parent=1 // pred_region
      _
    $region9: #{ensemble_model_forward.1} parent=1 // pred_fallthru
      _
    // Predicated region
    $region10: #{ensemble_model_forward.1} parent=1 // pred_check
      _
    $region11: #{ensemble_model_forward.1} parent=1 // pred_check_branch
      %20 = sbr.rel (0) target = $region13
    $region12: #{ensemble_model_forward.1} parent=1 // pred_region
      %s22 = ssub.s32 2048, 2048
      %23 = vsyncadd [#allocation3], %s22
      %s24 = sshll.u32 [#allocation2], 4
      %s25 = int_to_ptr.vmem [resolvable:$true] %s24
      %30 = dma.hbm_to_vmem [thread:$0]  %s2, 2048, %s25, [#allocation3], 128, 128, 8
    $region13: #{ensemble_model_forward.1} parent=1 // pred_fallthru
      _
    // Predicated region
    $region14: #{ensemble_model_forward.1} parent=1 // pred_check
      _
    $region15: #{ensemble_model_forward.1} parent=1 // pred_check_branch
      %32 = sbr.rel (0) target = $region17
    $region16: #{ensemble_model_forward.1} parent=1 // pred_region
      %s34 = ssub.s32 2048, 2048
      %35 = vsyncadd [#allocation5], %s34
      %s36 = sshll.u32 [#allocation4], 4
      %s37 = int_to_ptr.vmem [resolvable:$true] %s36
      %42 = dma.hbm_to_vmem [thread:$0]  %s3, 2048, %s37, [#allocation5], 128, 128, 8
    $region17: #{ensemble_model_forward.1} parent=1 // pred_fallthru
      _
    // Predicated region
    $region18: #{ensemble_model_forward.1} parent=1 // pred_check
      _
    $region19: #{ensemble_model_forward.1} parent=1 // pred_check_branch
      %44 = sbr.rel (0) target = $region21
    $region20: #{ensemble_model_forward.1} parent=1 // pred_region
      %s46 = ssub.s32 2048, 2048
      %47 = vsyncadd [#allocation5], %s46
      %s48 = sshll.u32 [#allocation6], 4
      %s49 = int_to_ptr.vmem [resolvable:$true] %s48
      %54 = dma.hbm_to_vmem [thread:$0]  %s4, 2048, %s49, [#allocation5], 128, 128, 8
    $region21: #{ensemble_model_forward.1} parent=1 // pred_fallthru
      _
    // Predicated region
    $region22: #{ensemble_model_forward.1} parent=1 // pred_check
      _
    $region23: #{ensemble_model_forward.1} parent=1 // pred_check_branch
      %56 = sbr.rel (0) target = $region25
    $region24: #{ensemble_model_forward.1} parent=1 // pred_region
      %s58 = ssub.s32 2048, 2048
      %59 = vsyncadd [#allocation8], %s58
      %s60 = sshll.u32 [#allocation7], 4
      %s61 = int_to_ptr.vmem [resolvable:$true] %s60
      %66 = dma.hbm_to_vmem [thread:$0]  %s5, 2048, %s61, [#allocation8], 128, 128, 8
    $region25: #{ensemble_model_forward.1} parent=1 // pred_fallthru
      _
    // Predicated region
    $region26: #{ensemble_model_forward.1} parent=1 // pred_check
      _
    $region27: #{ensemble_model_forward.1} parent=1 // pred_check_branch
      %68 = sbr.rel (0) target = $region29
    $region28: #{ensemble_model_forward.1} parent=1 // pred_region
      _
    $region29: #{ensemble_model_forward.1} parent=1 // pred_fallthru
      _
    // Predicated region
    $region30: #{ensemble_model_forward.1} parent=1 // pred_check
      _
    $region31: #{ensemble_model_forward.1} parent=1 // pred_check_branch
      %70 = sbr.rel (0) target = $region33
    $region32: #{ensemble_model_forward.1} parent=1 // pred_region
      %71 = dma.done [#allocation3], 2048
    $region33: #{ensemble_model_forward.1} parent=1 // pred_fallthru
      _
    // Predicated region
    $region34: #{ensemble_model_forward.1} parent=1 // pred_check
      _
    $region35: #{ensemble_model_forward.1} parent=1 // pred_check_branch
      %73 = sbr.rel (0) target = $region37
    $region36: #{ensemble_model_forward.1} parent=1 // pred_region
      %74 = dma.done [#allocation5], 2048
    $region37: #{ensemble_model_forward.1} parent=1 // pred_fallthru
      _
    // Predicated region
    $region38: #{ensemble_model_forward.1} parent=1 // pred_check
      _
    $region39: #{ensemble_model_forward.1} parent=1 // pred_check_branch
      %76 = sbr.rel (0) target = $region41
    $region40: #{ensemble_model_forward.1} parent=1 // pred_region
      %77 = dma.done [#allocation5], 2048
    $region41: #{ensemble_model_forward.1} parent=1 // pred_fallthru
      _
    // Predicated region
    $region42: #{ensemble_model_forward.1} parent=1 // pred_check
      _
    $region43: #{ensemble_model_forward.1} parent=1 // pred_check_branch
      %79 = sbr.rel (0) target = $region45
    $region44: #{ensemble_model_forward.1} parent=1 // pred_region
      %80 = dma.done [#allocation8], 2048
    $region45: #{ensemble_model_forward.1} parent=1 // pred_fallthru
      _
    %v81 = vld [vmem:[%s0] sm:$0xff]
    %v82 = vld [vmem:[%s1] sm:$0xff]
    %v83 = vld [vmem:[%s1 + $0x8] sm:$0xff]
    %v84 = vld [vmem:[%s1 + $0x10] sm:$0xff]
    %v85 = vld [vmem:[%s1 + $0x18] sm:$0xf]
    %v86 = vld [vmem:[%s6] sm:$0x1]
    %v87 = vlaneseq
    %v88 = vshrl.u32 %v87, 7
    %v89 = vsub.s32 0, %v88
    %v90 = vrot.slane %v86, %v89
    %vm91 = vcmask 228352
    %v93 = vsel %vm91, %v81, 0
    %vm95 = vcmask 1043456
    %v97 = vsel %vm95, %v85, 0
    %99 = vmatprep.subr.mxu0 0.0
    %100 = vmatpush1.msra.mxu0 %v82
    %101 = vmatprep.subr.mxu0 0.0
    %102 = vmatpush1.msra.mxu0 %v83
    %103 = vmatprep.subr.mxu0 0.0
    %104 = vmatpush1.msra.mxu0 %v84
    %105 = vmatprep.subr.mxu0 0.0
    %106 = vmatpush1.msra.mxu0 %v97
    %107 = vmatprep.subr.mxu0 0.0
    %108 = vmatpush1.msra.mxu0 0.0
    %109 = vmatprep.subr.mxu0 0.0
    %110 = vmatpush1.msra.mxu0 0.0
    %111 = vmatprep.subr.mxu0 0.0
    %112 = vmatpush1.msra.mxu0 0.0
    %113 = vmatprep.subr.mxu0 0.0
    %114 = vmatpush1.msra.mxu0 0.0
    %115 = vmatprep.subr.mxu0 0.0
    %116 = vmatpush1.msra.mxu0 0.0
    %117 = vmatprep.subr.mxu0 0.0
    %118 = vmatpush1.msra.mxu0 0.0
    %119 = vmatprep.subr.mxu0 0.0
    %120 = vmatpush1.msra.mxu0 0.0
    %121 = vmatprep.subr.mxu0 0.0
    %122 = vmatpush1.msra.mxu0 0.0
    %123 = vmatprep.subr.mxu0 0.0
    %124 = vmatpush1.msra.mxu0 0.0
    %125 = vmatprep.subr.mxu0 0.0
    %126 = vmatpush1.msra.mxu0 0.0
    %127 = vmatprep.subr.mxu0 0.0
    %128 = vmatpush1.msra.mxu0 0.0
    %129 = vmatprep.subr.mxu0 0.0
    %130 = vmatpush1.msra.mxu0 0.0
    %131 = vmatprep.subr.mxu0 0.0
    %132 = vmatpush1.msra.mxu0 0.0
    %133 = vmatprep.subr.mxu0 0.0
    %134 = vmatpush1.msra.mxu0 0.0
    %135 = vmatprep.subr.mxu0 0.0
    %136 = vmatpush1.msra.mxu0 0.0
    %137 = vmatprep.subr.mxu0 0.0
    %138 = vmatpush1.msra.mxu0 0.0
    %139 = vmatprep.subr.mxu0 0.0
    %140 = vmatpush1.msra.mxu0 0.0
    %141 = vmatprep.subr.mxu0 0.0
    %142 = vmatpush1.msra.mxu0 0.0
    %143 = vmatprep.subr.mxu0 0.0
    %144 = vmatpush1.msra.mxu0 0.0
    %145 = vmatprep.subr.mxu0 0.0
    %146 = vmatpush1.msra.mxu0 0.0
    %147 = vmatprep.subr.mxu0 0.0
    %148 = vmatpush1.msra.mxu0 0.0
    %149 = vmatprep.subr.mxu0 0.0
    %150 = vmatpush1.msra.mxu0 0.0
    %151 = vmatprep.subr.mxu0 0.0
    %152 = vmatpush1.msra.mxu0 0.0
    %153 = vmatprep.subr.mxu0 0.0
    %154 = vmatpush1.msra.mxu0 0.0
    %155 = vmatprep.subr.mxu0 0.0
    %156 = vmatpush1.msra.mxu0 0.0
    %157 = vmatprep.subr.mxu0 0.0
    %158 = vmatpush1.msra.mxu0 0.0
    %159 = vmatprep.subr.mxu0 0.0
    %160 = vmatpush1.msra.mxu0 0.0
    %161 = vmatprep.subr.mxu0 0.0
    %162 = vmatpush1.msra.mxu0 0.0
    %163 = vmatprep.mubr.f32.mxu0 0.0
    %164 = vmatmul.mubr.f32.gmra.mrb[0].mxu0 %v93
    %v165 = vpop.f32.mrb[0].mxu0
    %v166 = vadd.f32 %v90, %v165
    %v167 = vpop.f32.mrb[0].mxu0
    %168 = vdwg.mxu0
    %v169 = vxor.u32 %v166, 2147483648
    %v170 = vmul.f32 %v169, 1.442695
    %v171 = vpow.pop %v170
    %v172 = vadd.f32 %v171, 1.0
    %v173 = vrcp.pop %v172
    %v174 = vmul.f32 1.0, %v173
    %v175 = vmul.f32 %v166, %v174
    %v176 = vld [vmem:[#allocation2] sm:$0xff]
    %v177 = vld [vmem:[#allocation2 + $0x8] sm:$0xff]
    %v178 = vld [vmem:[#allocation2 + $0x10] sm:$0xff]
    %v179 = vld [vmem:[#allocation2 + $0x18] sm:$0xff]
    %v180 = vld [vmem:[#allocation2 + $0x20] sm:$0xff]
    %v181 = vld [vmem:[#allocation2 + $0x28] sm:$0xff]
    %v182 = vld [vmem:[#allocation2 + $0x30] sm:$0xff]
    %v183 = vld [vmem:[#allocation2 + $0x38] sm:$0xff]
    %v184 = vld [vmem:[#allocation2 + $0x40] sm:$0xff]
    %v185 = vld [vmem:[#allocation2 + $0x48] sm:$0xff]
    %v186 = vld [vmem:[#allocation2 + $0x50] sm:$0xff]
    %v187 = vld [vmem:[#allocation2 + $0x58] sm:$0xff]
    %v188 = vld [vmem:[#allocation2 + $0x60] sm:$0xff]
    %v189 = vld [vmem:[#allocation2 + $0x68] sm:$0xff]
    %v190 = vld [vmem:[#allocation2 + $0x70] sm:$0xff]
    %v191 = vld [vmem:[#allocation2 + $0x78] sm:$0xff]
    %v192 = vld [vmem:[%s6 + $0x1] sm:$0x1]
    %v193 = vlaneseq
    %v194 = vshrl.u32 %v193, 7
    %v195 = vsub.s32 0, %v194
    %v196 = vrot.slane %v192, %v195
    %197 = vmatprep.subr.mxu0 0.0
    %198 = vmatpush1.msra.mxu0 %v176
    %199 = vmatprep.subr.mxu0 0.0
    %200 = vmatpush1.msra.mxu0 %v177
    %201 = vmatprep.subr.mxu0 0.0
    %202 = vmatpush1.msra.mxu0 %v178
    %203 = vmatprep.subr.mxu0 0.0
    %204 = vmatpush1.msra.mxu0 %v179
    %205 = vmatprep.subr.mxu0 0.0
    %206 = vmatpush1.msra.mxu0 %v180
    %207 = vmatprep.subr.mxu0 0.0
    %208 = vmatpush1.msra.mxu0 %v181
    %209 = vmatprep.subr.mxu0 0.0
    %210 = vmatpush1.msra.mxu0 %v182
    %211 = vmatprep.subr.mxu0 0.0
    %212 = vmatpush1.msra.mxu0 %v183
    %213 = vmatprep.subr.mxu0 0.0
    %214 = vmatpush1.msra.mxu0 %v184
    %215 = vmatprep.subr.mxu0 0.0
    %216 = vmatpush1.msra.mxu0 %v185
    %217 = vmatprep.subr.mxu0 0.0
    %218 = vmatpush1.msra.mxu0 %v186
    %219 = vmatprep.subr.mxu0 0.0
    %220 = vmatpush1.msra.mxu0 %v187
    %221 = vmatprep.subr.mxu0 0.0
    %222 = vmatpush1.msra.mxu0 %v188
    %223 = vmatprep.subr.mxu0 0.0
    %224 = vmatpush1.msra.mxu0 %v189
    %225 = vmatprep.subr.mxu0 0.0
    %226 = vmatpush1.msra.mxu0 %v190
    %227 = vmatprep.subr.mxu0 0.0
    %228 = vmatpush1.msra.mxu0 %v191
    %229 = vmatprep.subr.mxu0 0.0
    %230 = vmatpush1.msra.mxu0 0.0
    %231 = vmatprep.subr.mxu0 0.0
    %232 = vmatpush1.msra.mxu0 0.0
    %233 = vmatprep.subr.mxu0 0.0
    %234 = vmatpush1.msra.mxu0 0.0
    %235 = vmatprep.subr.mxu0 0.0
    %236 = vmatpush1.msra.mxu0 0.0
    %237 = vmatprep.subr.mxu0 0.0
    %238 = vmatpush1.msra.mxu0 0.0
    %239 = vmatprep.subr.mxu0 0.0
    %240 = vmatpush1.msra.mxu0 0.0
    %241 = vmatprep.subr.mxu0 0.0
    %242 = vmatpush1.msra.mxu0 0.0
    %243 = vmatprep.subr.mxu0 0.0
    %244 = vmatpush1.msra.mxu0 0.0
    %245 = vmatprep.subr.mxu0 0.0
    %246 = vmatpush1.msra.mxu0 0.0
    %247 = vmatprep.subr.mxu0 0.0
    %248 = vmatpush1.msra.mxu0 0.0
    %249 = vmatprep.subr.mxu0 0.0
    %250 = vmatpush1.msra.mxu0 0.0
    %251 = vmatprep.subr.mxu0 0.0
    %252 = vmatpush1.msra.mxu0 0.0
    %253 = vmatprep.subr.mxu0 0.0
    %254 = vmatpush1.msra.mxu0 0.0
    %255 = vmatprep.subr.mxu0 0.0
    %256 = vmatpush1.msra.mxu0 0.0
    %257 = vmatprep.subr.mxu0 0.0
    %258 = vmatpush1.msra.mxu0 0.0
    %259 = vmatprep.subr.mxu0 0.0
    %260 = vmatpush1.msra.mxu0 0.0
    %261 = vmatprep.mubr.f32.mxu0 0.0
    %262 = vmatmul.mubr.f32.gmra.mrb[0].mxu0 %v175
    %v263 = vpop.f32.mrb[0].mxu0
    %v264 = vadd.f32 %v196, %v263
    %v265 = vpop.f32.mrb[0].mxu0
    %266 = vdwg.mxu0
    %v267 = vxor.u32 %v264, 2147483648
    %v268 = vmul.f32 %v267, 1.442695
    %v269 = vpow.pop %v268
    %v270 = vadd.f32 %v269, 1.0
    %v271 = vrcp.pop %v270
    %v272 = vmul.f32 1.0, %v271
    %v273 = vmul.f32 %v264, %v272
    %v274 = vld [vmem:[#allocation4] sm:$0xff]
    %v275 = vld [vmem:[#allocation4 + $0x8] sm:$0xff]
    %v276 = vld [vmem:[#allocation4 + $0x10] sm:$0xff]
    %v277 = vld [vmem:[#allocation4 + $0x18] sm:$0xff]
    %v278 = vld [vmem:[#allocation4 + $0x20] sm:$0xff]
    %v279 = vld [vmem:[#allocation4 + $0x28] sm:$0xff]
    %v280 = vld [vmem:[#allocation4 + $0x30] sm:$0xff]
    %v281 = vld [vmem:[#allocation4 + $0x38] sm:$0xff]
    %v282 = vld [vmem:[#allocation4 + $0x40] sm:$0xff]
    %v283 = vld [vmem:[#allocation4 + $0x48] sm:$0xff]
    %v284 = vld [vmem:[#allocation4 + $0x50] sm:$0xff]
    %v285 = vld [vmem:[#allocation4 + $0x58] sm:$0xff]
    %v286 = vld [vmem:[#allocation4 + $0x60] sm:$0xff]
    %v287 = vld [vmem:[#allocation4 + $0x68] sm:$0xff]
    %v288 = vld [vmem:[#allocation4 + $0x70] sm:$0xff]
    %v289 = vld [vmem:[#allocation4 + $0x78] sm:$0xff]
    %v290 = vld [vmem:[%s6 + $0x2] sm:$0x1]
    %v291 = vlaneseq
    %v292 = vshrl.u32 %v291, 7
    %v293 = vsub.s32 0, %v292
    %v294 = vrot.slane %v290, %v293
    %295 = vmatprep.subr.mxu0 0.0
    %296 = vmatpush1.msra.mxu0 %v274
    %297 = vmatprep.subr.mxu0 0.0
    %298 = vmatpush1.msra.mxu0 %v275
    %299 = vmatprep.subr.mxu0 0.0
    %300 = vmatpush1.msra.mxu0 %v276
    %301 = vmatprep.subr.mxu0 0.0
    %302 = vmatpush1.msra.mxu0 %v277
    %303 = vmatprep.subr.mxu0 0.0
    %304 = vmatpush1.msra.mxu0 %v278
    %305 = vmatprep.subr.mxu0 0.0
    %306 = vmatpush1.msra.mxu0 %v279
    %307 = vmatprep.subr.mxu0 0.0
    %308 = vmatpush1.msra.mxu0 %v280
    %309 = vmatprep.subr.mxu0 0.0
    %310 = vmatpush1.msra.mxu0 %v281
    %311 = vmatprep.subr.mxu0 0.0
    %312 = vmatpush1.msra.mxu0 %v282
    %313 = vmatprep.subr.mxu0 0.0
    %314 = vmatpush1.msra.mxu0 %v283
    %315 = vmatprep.subr.mxu0 0.0
    %316 = vmatpush1.msra.mxu0 %v284
    %317 = vmatprep.subr.mxu0 0.0
    %318 = vmatpush1.msra.mxu0 %v285
    %319 = vmatprep.subr.mxu0 0.0
    %320 = vmatpush1.msra.mxu0 %v286
    %321 = vmatprep.subr.mxu0 0.0
    %322 = vmatpush1.msra.mxu0 %v287
    %323 = vmatprep.subr.mxu0 0.0
    %324 = vmatpush1.msra.mxu0 %v288
    %325 = vmatprep.subr.mxu0 0.0
    %326 = vmatpush1.msra.mxu0 %v289
    %327 = vmatprep.subr.mxu0 0.0
    %328 = vmatpush1.msra.mxu0 0.0
    %329 = vmatprep.subr.mxu0 0.0
    %330 = vmatpush1.msra.mxu0 0.0
    %331 = vmatprep.subr.mxu0 0.0
    %332 = vmatpush1.msra.mxu0 0.0
    %333 = vmatprep.subr.mxu0 0.0
    %334 = vmatpush1.msra.mxu0 0.0
    %335 = vmatprep.subr.mxu0 0.0
    %336 = vmatpush1.msra.mxu0 0.0
    %337 = vmatprep.subr.mxu0 0.0
    %338 = vmatpush1.msra.mxu0 0.0
    %339 = vmatprep.subr.mxu0 0.0
    %340 = vmatpush1.msra.mxu0 0.0
    %341 = vmatprep.subr.mxu0 0.0
    %342 = vmatpush1.msra.mxu0 0.0
    %343 = vmatprep.subr.mxu0 0.0
    %344 = vmatpush1.msra.mxu0 0.0
    %345 = vmatprep.subr.mxu0 0.0
    %346 = vmatpush1.msra.mxu0 0.0
    %347 = vmatprep.subr.mxu0 0.0
    %348 = vmatpush1.msra.mxu0 0.0
    %349 = vmatprep.subr.mxu0 0.0
    %350 = vmatpush1.msra.mxu0 0.0
    %351 = vmatprep.subr.mxu0 0.0
    %352 = vmatpush1.msra.mxu0 0.0
    %353 = vmatprep.subr.mxu0 0.0
    %354 = vmatpush1.msra.mxu0 0.0
    %355 = vmatprep.subr.mxu0 0.0
    %356 = vmatpush1.msra.mxu0 0.0
    %357 = vmatprep.subr.mxu0 0.0
    %358 = vmatpush1.msra.mxu0 0.0
    %359 = vmatprep.mubr.f32.mxu0 0.0
    %360 = vmatmul.mubr.f32.gmra.mrb[0].mxu0 %v273
    %v361 = vpop.f32.mrb[0].mxu0
    %v362 = vadd.f32 %v294, %v361
    %v363 = vpop.f32.mrb[0].mxu0
    %364 = vdwg.mxu0
    %v365 = vxor.u32 %v362, 2147483648
    %v366 = vmul.f32 %v365, 1.442695
    %v367 = vpow.pop %v366
    %v368 = vadd.f32 %v367, 1.0
    %v369 = vrcp.pop %v368
    %v370 = vmul.f32 1.0, %v369
    %v371 = vmul.f32 %v362, %v370
    %v372 = vld [vmem:[#allocation6] sm:$0xff]
    %v373 = vld [vmem:[#allocation6 + $0x8] sm:$0xff]
    %v374 = vld [vmem:[#allocation6 + $0x10] sm:$0xff]
    %v375 = vld [vmem:[#allocation6 + $0x18] sm:$0xff]
    %v376 = vld [vmem:[#allocation6 + $0x20] sm:$0xff]
    %v377 = vld [vmem:[#allocation6 + $0x28] sm:$0xff]
    %v378 = vld [vmem:[#allocation6 + $0x30] sm:$0xff]
    %v379 = vld [vmem:[#allocation6 + $0x38] sm:$0xff]
    %v380 = vld [vmem:[#allocation6 + $0x40] sm:$0xff]
    %v381 = vld [vmem:[#allocation6 + $0x48] sm:$0xff]
    %v382 = vld [vmem:[#allocation6 + $0x50] sm:$0xff]
    %v383 = vld [vmem:[#allocation6 + $0x58] sm:$0xff]
    %v384 = vld [vmem:[#allocation6 + $0x60] sm:$0xff]
    %v385 = vld [vmem:[#allocation6 + $0x68] sm:$0xff]
    %v386 = vld [vmem:[#allocation6 + $0x70] sm:$0xff]
    %v387 = vld [vmem:[#allocation6 + $0x78] sm:$0xff]
    %v388 = vld [vmem:[%s6 + $0x3] sm:$0x1]
    %v389 = vlaneseq
    %v390 = vshrl.u32 %v389, 7
    %v391 = vsub.s32 0, %v390
    %v392 = vrot.slane %v388, %v391
    %393 = vmatprep.subr.mxu0 0.0
    %394 = vmatpush1.msra.mxu0 %v372
    %395 = vmatprep.subr.mxu0 0.0
    %396 = vmatpush1.msra.mxu0 %v373
    %397 = vmatprep.subr.mxu0 0.0
    %398 = vmatpush1.msra.mxu0 %v374
    %399 = vmatprep.subr.mxu0 0.0
    %400 = vmatpush1.msra.mxu0 %v375
    %401 = vmatprep.subr.mxu0 0.0
    %402 = vmatpush1.msra.mxu0 %v376
    %403 = vmatprep.subr.mxu0 0.0
    %404 = vmatpush1.msra.mxu0 %v377
    %405 = vmatprep.subr.mxu0 0.0
    %406 = vmatpush1.msra.mxu0 %v378
    %407 = vmatprep.subr.mxu0 0.0
    %408 = vmatpush1.msra.mxu0 %v379
    %409 = vmatprep.subr.mxu0 0.0
    %410 = vmatpush1.msra.mxu0 %v380
    %411 = vmatprep.subr.mxu0 0.0
    %412 = vmatpush1.msra.mxu0 %v381
    %413 = vmatprep.subr.mxu0 0.0
    %414 = vmatpush1.msra.mxu0 %v382
    %415 = vmatprep.subr.mxu0 0.0
    %416 = vmatpush1.msra.mxu0 %v383
    %417 = vmatprep.subr.mxu0 0.0
    %418 = vmatpush1.msra.mxu0 %v384
    %419 = vmatprep.subr.mxu0 0.0
    %420 = vmatpush1.msra.mxu0 %v385
    %421 = vmatprep.subr.mxu0 0.0
    %422 = vmatpush1.msra.mxu0 %v386
    %423 = vmatprep.subr.mxu0 0.0
    %424 = vmatpush1.msra.mxu0 %v387
    %425 = vmatprep.subr.mxu0 0.0
    %426 = vmatpush1.msra.mxu0 0.0
    %427 = vmatprep.subr.mxu0 0.0
    %428 = vmatpush1.msra.mxu0 0.0
    %429 = vmatprep.subr.mxu0 0.0
    %430 = vmatpush1.msra.mxu0 0.0
    %431 = vmatprep.subr.mxu0 0.0
    %432 = vmatpush1.msra.mxu0 0.0
    %433 = vmatprep.subr.mxu0 0.0
    %434 = vmatpush1.msra.mxu0 0.0
    %435 = vmatprep.subr.mxu0 0.0
    %436 = vmatpush1.msra.mxu0 0.0
    %437 = vmatprep.subr.mxu0 0.0
    %438 = vmatpush1.msra.mxu0 0.0
    %439 = vmatprep.subr.mxu0 0.0
    %440 = vmatpush1.msra.mxu0 0.0
    %441 = vmatprep.subr.mxu0 0.0
    %442 = vmatpush1.msra.mxu0 0.0
    %443 = vmatprep.subr.mxu0 0.0
    %444 = vmatpush1.msra.mxu0 0.0
    %445 = vmatprep.subr.mxu0 0.0
    %446 = vmatpush1.msra.mxu0 0.0
    %447 = vmatprep.subr.mxu0 0.0
    %448 = vmatpush1.msra.mxu0 0.0
    %449 = vmatprep.subr.mxu0 0.0
    %450 = vmatpush1.msra.mxu0 0.0
    %451 = vmatprep.subr.mxu0 0.0
    %452 = vmatpush1.msra.mxu0 0.0
    %453 = vmatprep.subr.mxu0 0.0
    %454 = vmatpush1.msra.mxu0 0.0
    %455 = vmatprep.subr.mxu0 0.0
    %456 = vmatpush1.msra.mxu0 0.0
    %457 = vmatprep.mubr.f32.mxu0 0.0
    %458 = vmatmul.mubr.f32.gmra.mrb[0].mxu0 %v371
    %v459 = vpop.f32.mrb[0].mxu0
    %v460 = vadd.f32 %v392, %v459
    %v461 = vpop.f32.mrb[0].mxu0
    %462 = vdwg.mxu0
    %v463 = vxor.u32 %v460, 2147483648
    %v464 = vmul.f32 %v463, 1.442695
    %v465 = vpow.pop %v464
    %v466 = vadd.f32 %v465, 1.0
    %v467 = vrcp.pop %v466
    %v468 = vmul.f32 1.0, %v467
    %v469 = vmul.f32 %v460, %v468
    %v470 = vld [vmem:[#allocation7] sm:$0xff]
    %v471 = vld [vmem:[#allocation7 + $0x8] sm:$0xff]
    %v472 = vld [vmem:[#allocation7 + $0x10] sm:$0xff]
    %v473 = vld [vmem:[#allocation7 + $0x18] sm:$0xff]
    %v474 = vld [vmem:[#allocation7 + $0x20] sm:$0xff]
    %v475 = vld [vmem:[#allocation7 + $0x28] sm:$0xff]
    %v476 = vld [vmem:[#allocation7 + $0x30] sm:$0xff]
    %v477 = vld [vmem:[#allocation7 + $0x38] sm:$0xff]
    %v478 = vld [vmem:[#allocation7 + $0x40] sm:$0xff]
    %v479 = vld [vmem:[#allocation7 + $0x48] sm:$0xff]
    %v480 = vld [vmem:[#allocation7 + $0x50] sm:$0xff]
    %v481 = vld [vmem:[#allocation7 + $0x58] sm:$0xff]
    %v482 = vld [vmem:[#allocation7 + $0x60] sm:$0xff]
    %v483 = vld [vmem:[#allocation7 + $0x68] sm:$0xff]
    %v484 = vld [vmem:[#allocation7 + $0x70] sm:$0xff]
    %v485 = vld [vmem:[#allocation7 + $0x78] sm:$0xff]
    %v486 = vld [vmem:[%s6 + $0x4] sm:$0x1]
    %v487 = vlaneseq
    %v488 = vshrl.u32 %v487, 7
    %v489 = vsub.s32 0, %v488
    %v490 = vrot.slane %v486, %v489
    %491 = vmatprep.subr.mxu0 0.0
    %492 = vmatpush1.msra.mxu0 %v470
    %493 = vmatprep.subr.mxu0 0.0
    %494 = vmatpush1.msra.mxu0 %v471
    %495 = vmatprep.subr.mxu0 0.0
    %496 = vmatpush1.msra.mxu0 %v472
    %497 = vmatprep.subr.mxu0 0.0
    %498 = vmatpush1.msra.mxu0 %v473
    %499 = vmatprep.subr.mxu0 0.0
    %500 = vmatpush1.msra.mxu0 %v474
    %501 = vmatprep.subr.mxu0 0.0
    %502 = vmatpush1.msra.mxu0 %v475
    %503 = vmatprep.subr.mxu0 0.0
    %504 = vmatpush1.msra.mxu0 %v476
    %505 = vmatprep.subr.mxu0 0.0
    %506 = vmatpush1.msra.mxu0 %v477
    %507 = vmatprep.subr.mxu0 0.0
    %508 = vmatpush1.msra.mxu0 %v478
    %509 = vmatprep.subr.mxu0 0.0
    %510 = vmatpush1.msra.mxu0 %v479
    %511 = vmatprep.subr.mxu0 0.0
    %512 = vmatpush1.msra.mxu0 %v480
    %513 = vmatprep.subr.mxu0 0.0
    %514 = vmatpush1.msra.mxu0 %v481
    %515 = vmatprep.subr.mxu0 0.0
    %516 = vmatpush1.msra.mxu0 %v482
    %517 = vmatprep.subr.mxu0 0.0
    %518 = vmatpush1.msra.mxu0 %v483
    %519 = vmatprep.subr.mxu0 0.0
    %520 = vmatpush1.msra.mxu0 %v484
    %521 = vmatprep.subr.mxu0 0.0
    %522 = vmatpush1.msra.mxu0 %v485
    %523 = vmatprep.subr.mxu0 0.0
    %524 = vmatpush1.msra.mxu0 0.0
    %525 = vmatprep.subr.mxu0 0.0
    %526 = vmatpush1.msra.mxu0 0.0
    %527 = vmatprep.subr.mxu0 0.0
    %528 = vmatpush1.msra.mxu0 0.0
    %529 = vmatprep.subr.mxu0 0.0
    %530 = vmatpush1.msra.mxu0 0.0
    %531 = vmatprep.subr.mxu0 0.0
    %532 = vmatpush1.msra.mxu0 0.0
    %533 = vmatprep.subr.mxu0 0.0
    %534 = vmatpush1.msra.mxu0 0.0
    %535 = vmatprep.subr.mxu0 0.0
    %536 = vmatpush1.msra.mxu0 0.0
    %537 = vmatprep.subr.mxu0 0.0
    %538 = vmatpush1.msra.mxu0 0.0
    %539 = vmatprep.subr.mxu0 0.0
    %540 = vmatpush1.msra.mxu0 0.0
    %541 = vmatprep.subr.mxu0 0.0
    %542 = vmatpush1.msra.mxu0 0.0
    %543 = vmatprep.subr.mxu0 0.0
    %544 = vmatpush1.msra.mxu0 0.0
    %545 = vmatprep.subr.mxu0 0.0
    %546 = vmatpush1.msra.mxu0 0.0
    %547 = vmatprep.subr.mxu0 0.0
    %548 = vmatpush1.msra.mxu0 0.0
    %549 = vmatprep.subr.mxu0 0.0
    %550 = vmatpush1.msra.mxu0 0.0
    %551 = vmatprep.subr.mxu0 0.0
    %552 = vmatpush1.msra.mxu0 0.0
    %553 = vmatprep.subr.mxu0 0.0
    %554 = vmatpush1.msra.mxu0 0.0
    %555 = vmatprep.mubr.f32.mxu0 0.0
    %556 = vmatmul.mubr.f32.gmra.mrb[0].mxu0 %v469
    %v557 = vpop.f32.mrb[0].mxu0
    %v558 = vadd.f32 %v490, %v557
    %v559 = vpop.f32.mrb[0].mxu0
    %560 = vdwg.mxu0
    %561 = vst [vmem:[%s7] sm:$0xff] %v558
    // Predicated region
    $region46: #{ensemble_model_forward.1} parent=1 // pred_check
      _
    $region47: #{ensemble_model_forward.1} parent=1 // pred_check_branch
      %563 = sbr.rel (0) target = $region49
    $region48: #{ensemble_model_forward.1} parent=1 // pred_region
      _
    $region49: #{ensemble_model_forward.1} parent=1 // pred_fallthru
      _
    // Predicated region
    $region50: #{ensemble_model_forward.1} parent=1 // pred_check
      _
    $region51: #{ensemble_model_forward.1} parent=1 // pred_check_branch
      %565 = sbr.rel (0) target = $region53
    $region52: #{ensemble_model_forward.1} parent=1 // pred_region
      _
    $region53: #{ensemble_model_forward.1} parent=1 // pred_fallthru
      _
    %566 = vsyncpa [#allocation3], 1
    %567 = vsyncpa [#allocation5], 1
    %568 = vsyncpa [#allocation8], 1

</llo_original>
